<compile_context>
chip_gen: v6e
topology: v6e:2x2x1
jax: 0.10.0
libtpu: 0.0.40
codegen_flags: <defaults>
</compile_context>

<pallas_src>
import functools

import jax
import jax.numpy as jnp
from jax.experimental import pallas as pl
from jax.experimental.pallas import tpu as pltpu

# Below this many total bytes the op is launch-overhead dominated; let XLA do
# it (and fuse it into whatever consumes the result).
_XLA_BYPASS_BYTES = 2 * 1024 * 1024
# Per-block byte budget for the tiled VMEM path (measured tiled-copy data:
# blocks >= ~2 MiB reach ~85% of HBM roofline).
_MAX_BLOCK_BYTES = 4 * 1024 * 1024


def _xla_last_time_step(last_step, rnn_layers, num_directions):
    """Pure-JAX path (tiny shapes): mirrors the PyTorch view/permute/reshape."""
    batch = last_step.shape[1]
    ls = last_step.reshape(rnn_layers, num_directions, batch, -1)
    ls = ls[rnn_layers - 1]              # (D, B, H)
    ls = jnp.transpose(ls, (1, 0, 2))    # (B, D, H)
    return ls.reshape(batch, -1)         # (B, D*H)


# ---------------------------------------------------------------------------
# Path 1: HBM -> HBM strided DMA (no VMEM round trip, no vector-unit work).
# Used for large problems whose hidden size is not lane-dense (H % 128 != 0),
# where a VMEM copy kernel would pay masked vst.msk stores / lane shifts.
# ---------------------------------------------------------------------------
def _dma_kernel(h_hbm, o_hbm, sem, *, last_layer_off, num_directions, hidden):
    def copy(d):
        return pltpu.make_async_copy(
            h_hbm.at[last_layer_off + d],                  # (B, H) in HBM
            o_hbm.at[:, d * hidden:(d + 1) * hidden],      # (B, H) HBM window
            sem.at[d],
        )

    for d in range(num_directions):
        copy(d).start()
    for d in range(num_directions):
        copy(d).wait()


def _dma_last_time_step(last_step, rnn_layers, num_directions):
    _, batch, hidden = last_step.shape
    itemsize = jnp.dtype(last_step.dtype).itemsize
    bytes_accessed = 2 * num_directions * batch * hidden * itemsize
    kernel = functools.partial(
        _dma_kernel,
        last_layer_off=(rnn_layers - 1) * num_directions,
        num_directions=num_directions,
        hidden=hidden,
    )
    return pl.pallas_call(
        kernel,
        out_shape=jax.ShapeDtypeStruct((batch, num_directions * hidden),
                                       last_step.dtype),
        in_specs=[pl.BlockSpec(memory_space=pl.ANY)],
        out_specs=pl.BlockSpec(memory_space=pl.ANY),
        scratch_shapes=[pltpu.SemaphoreType.DMA((num_directions,))],
        cost_estimate=pl.CostEstimate(flops=0, transcendentals=0,
                                      bytes_accessed=bytes_accessed),
    )(last_step)


# ---------------------------------------------------------------------------
# Path 2: batch-tiled VMEM copy (lane-dense hidden sizes, H % 128 == 0).
# ---------------------------------------------------------------------------
def _vmem_kernel(h_ref, o_ref, *, num_directions, hidden):
    # h_ref: (D, tb, H) last-layer slab;  o_ref: (tb, D*H).
    # Per-direction static-slice stores: each slice starts at d*H (a multiple
    # of 128 on this path), so every store is an unmasked lane-dense vst and
    # no (tb, D*H) concat temporary has to live in vregs.
    for d in range(num_directions):
        o_ref[:, d * hidden:(d + 1) * hidden] = h_ref[d]


def _choose_batch_tile(batch, num_directions, hidden, itemsize,
                       max_block_bytes=_MAX_BLOCK_BYTES):
    """Sublane-aligned batch tile under a per-block byte budget."""
    # dtype-aware sublane packing: f32 -> 8 rows/vreg, bf16 -> 16, int8 -> 32.
    sub = max(8, 32 // max(1, itemsize))
    row_bytes = num_directions * hidden * itemsize
    tb = max(1, max_block_bytes // max(1, row_bytes))
    tb = max(sub, (tb // sub) * sub)
    if tb >= batch:
        # Whole problem fits in one block.  Still split into >= 2 sublane-
        # aligned grid steps when the batch allows so the v7x megacore
        # "parallel" axis gives both TensorCores work; the extra ~0.35 us
        # step is noise on v5e/v6e.
        if batch >= 2 * sub:
            half = -(-batch // 2)
            tb = -(-half // sub) * sub
        else:
            tb = batch
    return tb


def _vmem_last_time_step(last_step, rnn_layers, num_directions):
    _, batch, hidden = last_step.shape
    itemsize = jnp.dtype(last_step.dtype).itemsize
    tb = _choose_batch_tile(batch, num_directions, hidden, itemsize)
    grid = (pl.cdiv(batch, tb),)   # ragged last block is masked by Pallas

    in_block_bytes = num_directions * tb * hidden * itemsize
    out_block_bytes = tb * num_directions * hidden * itemsize
    # Double-buffered in + out plus headroom; stays well under physical VMEM
    # on every generation (v5e/v6e 128 MiB, v7x 64 MiB).
    vmem_limit_bytes = min(2 * (in_block_bytes + out_block_bytes) + (8 << 20),
                           56 << 20)

    bytes_accessed = 2 * num_directions * batch * hidden * itemsize
    kernel = functools.partial(_vmem_kernel, num_directions=num_directions,
                               hidden=hidden)
    return pl.pallas_call(
        kernel,
        out_shape=jax.ShapeDtypeStruct((batch, num_directions * hidden),
                                       last_step.dtype),
        grid=grid,
        in_specs=[
            # Block of num_directions along dim 0: block index (rnn_layers-1)
            # selects exactly the last layer's (D, tb, H) slab, so earlier
            # layers are never DMA'd from HBM.
            pl.BlockSpec((num_directions, tb, hidden),
                         lambda b: (rnn_layers - 1, b, 0)),
        ],
        out_specs=pl.BlockSpec((tb, num_directions * hidden),
                               lambda b: (b, 0)),
        compiler_params=pltpu.CompilerParams(
            dimension_semantics=("parallel",),
            vmem_limit_bytes=vmem_limit_bytes),
        cost_estimate=pl.CostEstimate(flops=0, transcendentals=0,
                                      bytes_accessed=bytes_accessed),
    )(last_step)


# ---------------------------------------------------------------------------
# Public wrapper (dispatch).
# ---------------------------------------------------------------------------
def last_time_step(rnn_input, rnn_layers=1, bidirectional=False, *,
                   path="auto"):
    """Pallas equivalent of LastTimeStep.forward.

    rnn_input: (rnn_output, h_n) or (rnn_output, (h_n, c_n)) (LSTM case).
    path: "auto" | "xla" | "dma" | "vmem" (forced paths are for testing).
    """
    num_directions = 2 if bidirectional else 1

    last_step = rnn_input[1]
    if isinstance(last_step, tuple):     # LSTM: (h_n, c_n) -> h_n
        last_step = last_step[0]

    total_ld, batch, hidden = last_step.shape
    assert total_ld == rnn_layers * num_directions

    if num_directions == 1:
        # Pure slice of the leading axis -- XLA keeps it as a view / fuses it.
        return last_step[rnn_layers - 1]

    itemsize = jnp.dtype(last_step.dtype).itemsize
    total_bytes = num_directions * batch * hidden * itemsize

    if path == "auto":
        if total_bytes <= _XLA_BYPASS_BYTES:
            path = "xla"     # launch overhead would dominate; let XLA fuse it
        elif hidden % 128 != 0:
            path = "dma"     # lane-sparse output -> skip the VMEM round trip
        else:
            path = "vmem"

    if path == "xla":
        return _xla_last_time_step(last_step, rnn_layers, num_directions)
    if path == "dma":
        return _dma_last_time_step(last_step, rnn_layers, num_directions)
    if path == "vmem":
        return _vmem_last_time_step(last_step, rnn_layers, num_directions)
    raise ValueError(f"unknown path: {path}")


def _reference(last_step, rnn_layers, num_directions):
    """Pure-JAX reference mirroring the PyTorch code path."""
    if isinstance(last_step, tuple):
        last_step = last_step[0]
    return _xla_last_time_step(last_step, rnn_layers, num_directions)


if __name__ == "__main__":
    key = jax.random.PRNGKey(0)
    k_out, k_h, k_c, k_h2, k_h3, k_h4 = jax.random.split(key, 6)

    # 1) Spec-sized bidirectional LSTM input (B=2, H=32): auto-dispatch takes
    #    the tiny-shape XLA bypass (no pallas_call launch overhead).
    rnn_layers, batch, seq, hidden = 2, 2, 8, 32
    rnn_output = jax.random.normal(k_out, (batch, seq, 2 * hidden), jnp.float32)
    h_n = jax.random.normal(k_h, (rnn_layers * 2, batch, hidden), jnp.float32)
    c_n = jax.random.normal(k_c, (rnn_layers * 2, batch, hidden), jnp.float32)
    out = jax.block_until_ready(
        last_time_step((rnn_output, (h_n, c_n)), rnn_layers, bidirectional=True))
    assert out.shape == (batch, 2 * hidden), out.shape
    assert jnp.allclose(out, _reference((h_n, c_n), rnn_layers, 2))

    # 2) Tiled VMEM Pallas kernel (lane-dense H, multi-step "parallel" grid,
    #    per-direction lane-aligned slice stores).
    L2, B2, H2 = 2, 16, 256
    h_n2 = jax.random.normal(k_h2, (L2 * 2, B2, H2), jnp.float32)
    out2 = jax.block_until_ready(
        last_time_step((None, h_n2), L2, bidirectional=True, path="vmem"))
    assert out2.shape == (B2, 2 * H2), out2.shape
    assert jnp.allclose(out2, _reference(h_n2, L2, 2))

    # 3) HBM->HBM DMA Pallas kernel (lane-sparse H, no VMEM round trip).
    L3, B3, H3 = 3, 16, 96
    h_n3 = jax.random.normal(k_h3, (L3 * 2, B3, H3), jnp.float32)
    out3 = jax.block_until_ready(
        last_time_step((None, h_n3), L3, bidirectional=True, path="dma"))
    assert out3.shape == (B3, 2 * H3), out3.shape
    assert jnp.allclose(out3, _reference(h_n3, L3, 2))

    # 4) Unidirectional fast path (pure slice, no kernel).
    h_n4 = jax.random.normal(k_h4, (rnn_layers, batch, hidden), jnp.float32)
    out4 = jax.block_until_ready(
        last_time_step((rnn_output, h_n4), rnn_layers, bidirectional=False))
    assert out4.shape == (batch, hidden), out4.shape
    assert jnp.allclose(out4, _reference(h_n4, rnn_layers, 1))

    print("KERNEL_OK")
</pallas_src>

<mosaic_0001>
module attributes {stable_mosaic.version = 11 : i64} {
  func.func @_vmem_kernel(%arg0: i32, %arg1: memref<2x8x256xf32, #tpu.memory_space<vmem>>, %arg2: memref<8x512xf32, #tpu.memory_space<vmem>>) attributes {dimension_semantics = [#tpu.dimension_semantics<parallel>], iteration_bounds = array<i64: 2>, scalar_prefetch = 0 : i64, scratch_operands = 0 : i64, tpu.core_type = #tpu.core_type<tc>, window_params = [{transform_indices = @transform_0, window_bounds = array<i64: 2, 8, 256>}, {transform_indices = @transform_1, window_bounds = array<i64: 8, 512>}]} {
    %c0 = arith.constant 0 : index
    %c0_0 = arith.constant 0 : index
    %c0_1 = arith.constant 0 : index
    %0 = vector.load %arg1[%c0, %c0_0, %c0_1] : memref<2x8x256xf32, #tpu.memory_space<vmem>>, vector<1x8x256xf32>
    %1 = vector.shape_cast %0 : vector<1x8x256xf32> to vector<8x256xf32>
    %c0_2 = arith.constant 0 : index
    %c0_3 = arith.constant 0 : index
    %2 = vector.load %arg2[%c0_2, %c0_3] : memref<8x512xf32, #tpu.memory_space<vmem>>, vector<8x256xf32>
    tpu.vector_store %arg2[%c0_2, %c0_3], %1 {strides = array<i32>} : memref<8x512xf32, #tpu.memory_space<vmem>>, vector<8x256xf32>,
    %c1 = arith.constant 1 : index
    %c0_4 = arith.constant 0 : index
    %c0_5 = arith.constant 0 : index
    %3 = vector.load %arg1[%c1, %c0_4, %c0_5] : memref<2x8x256xf32, #tpu.memory_space<vmem>>, vector<1x8x256xf32>
    %4 = vector.shape_cast %3 : vector<1x8x256xf32> to vector<8x256xf32>
    %c0_6 = arith.constant 0 : index
    %c256 = arith.constant 256 : index
    %5 = vector.load %arg2[%c0_6, %c256] : memref<8x512xf32, #tpu.memory_space<vmem>>, vector<8x256xf32>
    tpu.vector_store %arg2[%c0_6, %c256], %4 {strides = array<i32>} : memref<8x512xf32, #tpu.memory_space<vmem>>, vector<8x256xf32>,
    return
  }
  func.func @transform_0(%arg0: i32) -> (i32, i32, i32) {
    %c1_i32 = arith.constant 1 : i32
    %c0_i32 = arith.constant 0 : i32
    %c0_i32_0 = arith.constant 0 : i32
    return %c1_i32, %arg0, %c0_i32 : i32, i32, i32
  }
  func.func @transform_1(%arg0: i32) -> (i32, i32) {
    %c0_i32 = arith.constant 0 : i32
    %c0_i32_0 = arith.constant 0 : i32
    return %arg0, %c0_i32 : i32, i32
  }
}

</mosaic_0001>

<llo_original>
// kernel: tpu_custom_call.1
$region0: #{tpu_custom_call.1}
  #allocation0 [shape = 'u32[]', space=smem, size = 0x4, offset = 0x4, fixed_abs, tag = 'smem constant byte address 0x4 - core index']
  #allocation1 [shape = 'u32[144,128]{1,0:T(1,128)}', space=vmem, size = 0x12000, scoped, tag = 'internal scratch']
  %s0 = inlined_call_operand.hbm [shape: f32[4,16,256], index: 0, kind: input, shape index: {}]
  %s1 = inlined_call_operand.hbm [shape: f32[16,512], index: 1, kind: output, shape index: {}]
  %s2 = sld [smem:[#allocation0]]
  $region41: #{tpu_custom_call.1} parent=0
    _
  %s4 = ssub.s32 1, %s2
  %s5 = scalar_select 0, %s4, %s2
  $region1: #{tpu_custom_call.1} parent=0
    #allocation2 [shape = 'u8[32768]{0}', space=vmem, size = 0x8000, scoped, tag = 'input window, operand 0']
    #allocation3 [shape = 's32[2]{0}', space=sflag, size = 0x8, scoped, tag = 'scoped memory for tpu_custom_call.1']
    #allocation4 [shape = 's32[2]{0}', space=sflag, size = 0x8, scoped, tag = 'scoped memory for tpu_custom_call.1']
    #allocation5 [shape = 'u8[32768]{0}', space=vmem, size = 0x8000, scoped, tag = 'output window, operand 0']
    %6 = vsyncpa [#allocation3], 0
    %s7 = scalar_lea.sflag [#allocation3], 1
    %8 = vsyncpa %s7, 0
    %9 = vsyncpa [#allocation4], 0
    %s10 = scalar_lea.sflag [#allocation4], 1
    %11 = vsyncpa %s10, 0
    loop: start=0, step=1, limit=4
    $region2: #{tpu_custom_call.1} parent=1 // loop_pre_header
      _
    $region3: #{tpu_custom_call.1} parent=1 // loop_header
      %s13 = sphi 0, %s17
      %p14 = scmp.ge.s32.totalorder %s13, 4
      %s23 = sphi 0, %s25
      %s26 = sphi 0, %s23
      %s27 = sphi 0, %s26
      %s43 = sphi 0, %s27
      %s49 = sphi 0, %s51
      %s52 = sphi 0, %s49
      %s53 = sphi 0, %s52
      %s69 = sphi 0, %s53
    $region4: #{tpu_custom_call.1} parent=1 // loop_header_branch
      %16 = sbr.rel (%p14) target = $region8
    $region5: #{tpu_custom_call.1} parent=1 // loop_body
      %s18 = ssub.s32 %s13, 1
      %s19 = ssub.s32 %s13, 2
      %s20 = sadd.s32 %s13, 1
      %s21 = ssub.s32 %s13, %s20
      %p22 = scmp.eq.s32.totalorder %s21, 0
      %s24 = sadd.s32 %s23, 1
      %s25 = scalar_select %p22, %s23, %s24
      %p28 = pneg %p22
      %p29 = scmp.eq.s32.totalorder %s13, 1
      %p30 = por %p28, %p29
      %p31 = scmp.ne.s32.totalorder %s23, %s26
      %p32 = scmp.eq.s32.totalorder %s13, 0
      %p33 = por %p31, %p32
      %p34 = scmp.ne.s32.totalorder %s23, %s26
      %p35 = scmp.eq.s32.totalorder %s18, 1
      %p36 = por %p34, %p35
      %p37 = scmp.ne.s32.totalorder %s26, %s27
      %p38 = scmp.eq.s32.totalorder %s18, 0
      %p39 = por %p37, %p38
      %p40 = scmp.ne.s32.totalorder %s26, %s27
      %p41 = scmp.eq.s32.totalorder %s19, 1
      %p42 = por %p40, %p41
      %p44 = scmp.ne.s32.totalorder %s27, %s43
      %p45 = scmp.eq.s32.totalorder %s19, 0
      %p46 = por %p44, %p45
      %s47 = ssub.s32 %s13, %s20
      %p48 = scmp.eq.s32.totalorder %s47, 0
      %s50 = sadd.s32 %s49, 1
      %s51 = scalar_select %p48, %s49, %s50
      %p54 = pneg %p48
      %p55 = scmp.eq.s32.totalorder %s13, 1
      %p56 = por %p54, %p55
      %p57 = scmp.ne.s32.totalorder %s49, %s52
      %p58 = scmp.eq.s32.totalorder %s13, 0
      %p59 = por %p57, %p58
      %p60 = scmp.ne.s32.totalorder %s49, %s52
      %p61 = scmp.eq.s32.totalorder %s18, 1
      %p62 = por %p60, %p61
      %p63 = scmp.ne.s32.totalorder %s52, %s53
      %p64 = scmp.eq.s32.totalorder %s18, 0
      %p65 = por %p63, %p64
      %p66 = scmp.ne.s32.totalorder %s52, %s53
      %p67 = scmp.eq.s32.totalorder %s19, 1
      %p68 = por %p66, %p67
      %p70 = scmp.ne.s32.totalorder %s53, %s69
      %p71 = scmp.eq.s32.totalorder %s19, 0
      %p72 = por %p70, %p71
      %p73 = scmp.le.s32.totalorder 1, %s13
      %p74 = scmp.lt.s32.totalorder %s13, 3
      %p75 = pnand %p73, %p74
      %p76 = pneg %p75
      // Predicated region
      $region9: #{tpu_custom_call.1} parent=5 // pred_check
        _
      $region10: #{tpu_custom_call.1} parent=5 // pred_check_branch
        %78 = sbr.rel (%p75) target = $region12
      $region11: #{tpu_custom_call.1} parent=5 // pred_region
        %s79 = ssub.s32 %s13, 1
      $region12: #{tpu_custom_call.1} parent=5 // pred_fallthru
        _
      %p80 = scmp.lt.s32.totalorder %s13, 2
      // Predicated region
      $region13: #{tpu_custom_call.1} parent=5 // pred_check
        %p81 = pneg %p80
      $region14: #{tpu_custom_call.1} parent=5 // pred_check_branch
        %83 = sbr.rel (%p81) target = $region16
      $region15: #{tpu_custom_call.1} parent=5 // pred_region
        // Predicated region
        $region17: #{tpu_custom_call.1} parent=15 // pred_check
          %p84 = pneg %p33
        $region18: #{tpu_custom_call.1} parent=15 // pred_check_branch
          %86 = sbr.rel (%p84) target = $region20
        $region19: #{tpu_custom_call.1} parent=15 // pred_region
          %s87 = sand.u32 %s23, 1
          %s88 = scalar_lea.sflag [#allocation3], %s87
          %s89 = sand.u32 %s23, 1
          %s90 = smul.addr %s89, 32
          %s91 = scalar_lea.vmem [#allocation2], %s90
          %s93 = ssub.s32 512, 512
          %94 = vsyncadd %s88, %s93
          %s95 = smul.addr %s13, 2
          %s96 = sadd.s32 %s95, 8
          %s97 = smul.addr %s96, 128
          %s98 = scalar_lea.hbm %s0, %s97
          %s99 = sshll.u32 %s91, 4
          %s100 = int_to_ptr.vmem [resolvable:$true] %s99
          %105 = dma.hbm_to_vmem [thread:$0]  %s98, 512, %s100, %s88, 512, 256, 16
        $region20: #{tpu_custom_call.1} parent=15 // pred_fallthru
          _
      $region16: #{tpu_custom_call.1} parent=5 // pred_fallthru
        _
      %p106 = scmp.le.s32.totalorder 1, %s13
      %p107 = scmp.lt.s32.totalorder %s13, 3
      %p108 = pnand %p106, %p107
      %p109 = pneg %p108
      // Predicated region
      $region21: #{tpu_custom_call.1} parent=5 // pred_check
        _
      $region22: #{tpu_custom_call.1} parent=5 // pred_check_branch
        %111 = sbr.rel (%p108) target = $region24
      $region23: #{tpu_custom_call.1} parent=5 // pred_region
        %s112 = ssub.s32 %s13, 1
        %s113 = sand.u32 %s26, 1
        %s114 = scalar_lea.sflag [#allocation3], %s113
        %s115 = sand.u32 %s26, 1
        %s116 = smul.addr %s115, 32
        %s117 = scalar_lea.vmem [#allocation2], %s116
        // Predicated region
        $region25: #{tpu_custom_call.1} parent=23 // pred_check
          %p118 = pneg %p39
        $region26: #{tpu_custom_call.1} parent=23 // pred_check_branch
          %120 = sbr.rel (%p118) target = $region28
        $region27: #{tpu_custom_call.1} parent=23 // pred_region
          %121 = dma.done %s114, 512
        $region28: #{tpu_custom_call.1} parent=23 // pred_fallthru
          _
        %s122 = sand.u32 %s26, 1
        %s123 = scalar_lea.sflag [#allocation3], %s122
        %s124 = sand.u32 %s26, 1
        %s125 = smul.addr %s124, 32
        %s126 = scalar_lea.vmem [#allocation2], %s125
        %p127 = pneg %p39
        %p128 = pneg %p36
        %p129 = pneg %p65
        %p130 = pneg %p62
        %s131 = sand.u32 %s52, 1
        %s132 = scalar_lea.sflag [#allocation4], %s131
        %s133 = sand.u32 %s52, 1
        %s134 = smul.addr %s133, 32
        %s135 = scalar_lea.vmem [#allocation5], %s134
        %v136 = vld [vmem:[%s117] sm:$0xff]
        %v137 = vld [vmem:[%s117 + $0x8] sm:$0xff]
        %138 = vst [vmem:[%s135] sm:$0xff] %v136
        %139 = vst [vmem:[%s135 + $0x8] sm:$0xff] %v137
        %s140 = scalar_lea.vmem %s117, 16 [#allocation2]
        %v141 = vld [vmem:[%s140] sm:$0xff]
        %v142 = vld [vmem:[%s140 + $0x8] sm:$0xff]
        %143 = vst [vmem:[%s135 + $0x10] sm:$0xff] %v141
        %144 = vst [vmem:[%s135 + $0x18] sm:$0xff] %v142
        %s145 = sand.u32 %s52, 1
        %s146 = scalar_lea.sflag [#allocation4], %s145
        %s147 = sand.u32 %s52, 1
        %s148 = smul.addr %s147, 32
        %s149 = scalar_lea.vmem [#allocation5], %s148
        // Predicated region
        $region29: #{tpu_custom_call.1} parent=23 // pred_check
          %p150 = pneg %p62
        $region30: #{tpu_custom_call.1} parent=23 // pred_check_branch
          %152 = sbr.rel (%p150) target = $region32
        $region31: #{tpu_custom_call.1} parent=23 // pred_region
          %s154 = ssub.s32 512, 512
          %155 = vsyncadd %s146, %s154
          %s156 = smul.addr %s18, 4
          %s157 = smul.addr %s156, 128
          %s158 = scalar_lea.hbm %s1, %s157
          %s160 = sshll.u32 %s149, 4
          %s161 = int_to_ptr.vmem [resolvable:$true] %s160
          %163 = dma.vmem_to_hbm [thread:$0]  %s161, 512, %s158, %s146
        $region32: #{tpu_custom_call.1} parent=23 // pred_fallthru
          _
      $region24: #{tpu_custom_call.1} parent=5 // pred_fallthru
        _
      %p164 = scmp.le.s32.totalorder 2, %s13
      // Predicated region
      $region33: #{tpu_custom_call.1} parent=5 // pred_check
        %p165 = pneg %p164
      $region34: #{tpu_custom_call.1} parent=5 // pred_check_branch
        %167 = sbr.rel (%p165) target = $region36
      $region35: #{tpu_custom_call.1} parent=5 // pred_region
        %s168 = ssub.s32 %s13, 2
        // Predicated region
        $region37: #{tpu_custom_call.1} parent=35 // pred_check
          %p169 = pneg %p68
        $region38: #{tpu_custom_call.1} parent=35 // pred_check_branch
          %171 = sbr.rel (%p169) target = $region40
        $region39: #{tpu_custom_call.1} parent=35 // pred_region
          %s172 = sand.u32 %s53, 1
          %s173 = scalar_lea.sflag [#allocation4], %s172
          %s174 = sand.u32 %s53, 1
          %s175 = smul.addr %s174, 32
          %s176 = scalar_lea.vmem [#allocation5], %s175
          %177 = dma.done %s173, 512
        $region40: #{tpu_custom_call.1} parent=35 // pred_fallthru
          _
      $region36: #{tpu_custom_call.1} parent=5 // pred_fallthru
        _
    $region6: #{tpu_custom_call.1} parent=1 // loop_footer
      %s17 = sadd.s32 1, %s13
    $region7: #{tpu_custom_call.1} parent=1 // loop_footer_branch
      %12 = sbr.rel target = $region3
    $region8: #{tpu_custom_call.1} parent=1 // loop_exit
      _
    %178 = vsyncpa [#allocation3], 1
    %s179 = scalar_lea.sflag [#allocation3], 1
    %180 = vsyncpa %s179, 1
    %181 = vsyncpa [#allocation4], 1
    %s182 = scalar_lea.sflag [#allocation4], 1
    %183 = vsyncpa %s182, 1

</llo_original>
